<compile_context>
chip_gen: v5e
topology: v5e:2x2
jax: 0.10.0
libtpu: 0.0.40
codegen_flags: <defaults>
</compile_context>

<pallas_src>
import functools

import jax
import jax.numpy as jnp
from jax import lax
from jax.experimental import pallas as pl
from jax.experimental.pallas import tpu as pltpu

_LANES = 128
_SUBLANES = 8


def _focal_loss_kernel(x_ref, t_ref, alpha_ref, out_ref, *,
                       gamma, hw, t_s, n_s_inner, need_mask):
    p = pl.program_id(1)
    s = pl.program_id(2)

    @pl.when(s == 0)
    def _():
        out_ref[...] = jnp.zeros_like(out_ref)

    c = x_ref.shape[0]
    t = t_ref[...]                                        # (t_s, 128) int32

    # Select-based gather of prob[target] / alpha[target]; one compare per
    # class, reused for both selects.  All full-vreg VPU work.
    probs = jnp.zeros((t_s, _LANES), jnp.float32)
    alpha_sel = jnp.zeros((t_s, _LANES), jnp.float32)
    for ci in range(c):
        eq = t == ci
        probs = jnp.where(eq, x_ref[ci].astype(jnp.float32), probs)
        alpha_sel = jnp.where(eq, alpha_ref[ci], alpha_sel)

    probs = probs + 1e-10

    if need_mask:
        # Mask padded / out-of-range samples.  Must stay above the log:
        # probs -> 1.0 (log = 0), alpha -> 0.0, so their contribution is
        # exactly zero and garbage can never turn into NaN/Inf.
        tile = p * n_s_inner + s
        rows = lax.broadcasted_iota(jnp.int32, (t_s, _LANES), 0)
        lanes = lax.broadcasted_iota(jnp.int32, (t_s, _LANES), 1)
        gidx = (tile * t_s + rows) * _LANES + lanes
        valid = gidx < hw
        probs = jnp.where(valid, probs, 1.0)
        alpha_sel = jnp.where(valid, alpha_sel, 0.0)

    log_probs = jnp.log(probs)

    if gamma > 0:
        one_minus_p = 1.0 - probs
        if float(gamma).is_integer():
            # integer gamma (default 2): repeated VPU multiplies, no EUP power.
            focal = one_minus_p
            for _ in range(int(gamma) - 1):
                focal = focal * one_minus_p
        else:
            focal = jnp.power(one_minus_p, gamma)
        batch_loss = -alpha_sel * focal * log_probs
    else:
        batch_loss = -alpha_sel * log_probs

    # Tree-sum this step's t_s/8 vregs down to one (8, 128) slab and
    # accumulate into the resident output block (pure vreg-wise adds).
    out_ref[...] += jnp.sum(
        batch_loss.reshape(t_s // _SUBLANES, _SUBLANES, _LANES), axis=0)


def focal_loss(inputs, target, alpha=None, gamma=2.0, size_average=True,
               block_bytes=8 * 1024 * 1024):
    """Focal loss matching FocalLoss.forward.

    inputs: (N, C, H, W) or (N, C, D, H, W) per-class probabilities (the
            module takes log of the gathered value), or (M, C).
    target: matching spatial shape of integer class ids.
    """
    if inputs.ndim == 2:
        m, c = inputs.shape
        x = jnp.transpose(inputs).reshape(1, c, m)
        t = target.reshape(1, m)
        n, hw = 1, m
    elif inputs.ndim in (4, 5):
        n, c = inputs.shape[0], inputs.shape[1]
        hw = 1
        for d in inputs.shape[2:]:
            hw *= d
        x = inputs.reshape(n, c, hw)
        t = target.reshape(n, hw)
    else:
        raise ValueError("inputs must be 2-D, 4-D or 5-D")
    t = t.astype(jnp.int32)

    if alpha is None:
        alpha_vec = jnp.ones((c,), jnp.float32) / c
    else:
        alpha_vec = jnp.asarray(alpha, jnp.float32).reshape(c)
        alpha_vec = alpha_vec / jnp.sum(alpha_vec)
    alpha_b = jnp.broadcast_to(alpha_vec[:, None], (c, _LANES))  # tiny, VMEM

    # Pad the flattened spatial axis to a multiple of 8*128 so the kernel gets
    # a sublane-dense (rows, 128) view with rows a multiple of 8; padded
    # samples are masked out in the kernel.
    unit = _SUBLANES * _LANES
    hw_pad = ((hw + unit - 1) // unit) * unit
    if hw_pad != hw:
        x = jnp.pad(x, ((0, 0), (0, 0), (0, hw_pad - hw)))
        t = jnp.pad(t, ((0, 0), (0, hw_pad - hw)))
    n_rows = hw_pad // _LANES
    x = x.reshape(n, c, n_rows, _LANES)
    t = t.reshape(n, n_rows, _LANES)

    # ~block_bytes of x per grid step; double-buffered x + target blocks plus
    # elementwise temporaries stay under the vmem_limit below on all gens.
    itemsize = jnp.dtype(inputs.dtype).itemsize
    rows_per_block = max(
        _SUBLANES,
        (block_bytes // (c * itemsize * _LANES)) // _SUBLANES * _SUBLANES)
    if n_rows <= rows_per_block:
        t_s, n_s_total = n_rows, 1
    else:
        t_s, n_s_total = rows_per_block, pl.cdiv(n_rows, rows_per_block)

    # 2-way split of the spatial reduction so both v7x TensorCores get work
    # even when n == 1 (free on single-core v5e/v6e).
    n_par = 2 if n_s_total >= 2 else 1
    n_s_inner = pl.cdiv(n_s_total, n_par)
    need_mask = (n_par * n_s_inner * t_s * _LANES) != hw

    def x_map(b, p, s):
        return (b, 0, jnp.minimum(p * n_s_inner + s, n_s_total - 1), 0)

    def t_map(b, p, s):
        return (b, jnp.minimum(p * n_s_inner + s, n_s_total - 1), 0)

    kernel = functools.partial(_focal_loss_kernel, gamma=float(gamma), hw=hw,
                               t_s=t_s, n_s_inner=n_s_inner,
                               need_mask=need_mask)

    partials = pl.pallas_call(
        kernel,
        out_shape=jax.ShapeDtypeStruct((n, n_par, _SUBLANES, _LANES),
                                       jnp.float32),
        grid_spec=pltpu.PrefetchScalarGridSpec(
            num_scalar_prefetch=0,
            grid=(n, n_par, n_s_inner),
            in_specs=[
                pl.BlockSpec((None, c, t_s, _LANES), x_map),       # probs
                pl.BlockSpec((None, t_s, _LANES), t_map),          # targets
                pl.BlockSpec((c, _LANES), lambda b, p, s: (0, 0)),  # alpha
            ],
            out_specs=pl.BlockSpec((None, None, _SUBLANES, _LANES),
                                   lambda b, p, s: (b, p, 0, 0)),
        ),
        compiler_params=pltpu.CompilerParams(
            dimension_semantics=("parallel", "parallel", "arbitrary"),
            vmem_limit_bytes=48 * 1024 * 1024),
    )(x, t, alpha_b)

    total = jnp.sum(partials)
    if size_average:
        total = total / jnp.float32(n * hw)
    return total


def focal_loss_ref(inputs, target, alpha=None, gamma=2.0, size_average=True):
    c = inputs.shape[1]
    if inputs.ndim == 2:
        x = inputs.astype(jnp.float32)
    else:
        x = jnp.moveaxis(inputs, 1, -1).reshape(-1, c).astype(jnp.float32)
    t = target.reshape(-1).astype(jnp.int32)
    if alpha is None:
        alpha_vec = jnp.ones((c,), jnp.float32) / c
    else:
        alpha_vec = jnp.asarray(alpha, jnp.float32).reshape(-1)
        alpha_vec = alpha_vec / jnp.sum(alpha_vec)
    mask = jax.nn.one_hot(t, c, dtype=jnp.float32)
    probs = jnp.sum(x * mask, axis=1, keepdims=True) + 1e-10
    log_probs = jnp.log(probs)
    a = alpha_vec[t][:, None]
    if gamma > 0:
        batch_loss = -a * jnp.power(1.0 - probs, gamma) * log_probs
    else:
        batch_loss = -a * log_probs
    return jnp.mean(batch_loss) if size_average else jnp.sum(batch_loss)


if __name__ == "__main__":
    key = jax.random.PRNGKey(0)
    k1, k2, k3, k4, k5, k6 = jax.random.split(key, 6)

    # Case 1: standard NCHW probs, default alpha, gamma=2, mean reduction.
    N, C, H, W = 2, 4, 16, 16
    p1 = jax.nn.softmax(jax.random.normal(k1, (N, C, H, W), jnp.float32),
                        axis=1)
    t1 = jax.random.randint(k2, (N, H, W), 0, C, jnp.int32)
    out1 = jax.block_until_ready(focal_loss(p1, t1, gamma=2.0))
    ref1 = jax.block_until_ready(focal_loss_ref(p1, t1, gamma=2.0))
    assert jnp.allclose(out1, ref1, rtol=1e-5, atol=1e-6), (out1, ref1)

    # Case 2: 5-D NCDHW, ragged spatial extent, several spatial tiles (tiny
    # block_bytes forces multi-tile + the 2-way spatial split + masking),
    # custom alpha, sum reduction.
    N2, C2, D2, H2, W2 = 1, 4, 3, 33, 37
    p2 = jax.nn.softmax(
        jax.random.normal(k3, (N2, C2, D2, H2, W2), jnp.float32), axis=1)
    t2 = jax.random.randint(k4, (N2, D2, H2, W2), 0, C2, jnp.int32)
    alpha2 = [1.0, 2.0, 3.0, 4.0]
    out2 = jax.block_until_ready(
        focal_loss(p2, t2, alpha=alpha2, gamma=2.0, size_average=False,
                   block_bytes=16 * 1024))
    ref2 = jax.block_until_ready(
        focal_loss_ref(p2, t2, alpha=alpha2, gamma=2.0, size_average=False))
    assert jnp.allclose(out2, ref2, rtol=1e-5, atol=1e-6), (out2, ref2)

    # Case 3: flat (M, C) input, gamma=0 branch, mean reduction.
    M3, C3 = 50, 4
    p3 = jax.nn.softmax(jax.random.normal(k5, (M3, C3), jnp.float32), axis=-1)
    t3 = jax.random.randint(k6, (M3,), 0, C3, jnp.int32)
    out3 = jax.block_until_ready(focal_loss(p3, t3, gamma=0))
    ref3 = jax.block_until_ready(focal_loss_ref(p3, t3, gamma=0))
    assert jnp.allclose(out3, ref3, rtol=1e-5, atol=1e-6), (out3, ref3)

    print("KERNEL_OK")
</pallas_src>

<mosaic_0001>
module attributes {stable_mosaic.version = 11 : i64} {
  func.func @_focal_loss_kernel(%arg0: i32, %arg1: i32, %arg2: i32, %arg3: memref<1x4x8x128xf32, #tpu.memory_space<vmem>>, %arg4: memref<1x8x128xi32, #tpu.memory_space<vmem>>, %arg5: memref<4x128xf32, #tpu.memory_space<vmem>>, %arg6: memref<1x1x8x128xf32, #tpu.memory_space<vmem>>) attributes {dimension_semantics = [#tpu.dimension_semantics<parallel>, #tpu.dimension_semantics<parallel>, #tpu.dimension_semantics<arbitrary>], iteration_bounds = array<i64: 2, 1, 1>, scalar_prefetch = 0 : i64, scratch_operands = 0 : i64, tpu.core_type = #tpu.core_type<tc>, window_params = [{transform_indices = @transform_0, window_bounds = array<i64: 1, 4, 8, 128>}, {transform_indices = @transform_1, window_bounds = array<i64: 1, 8, 128>}, {pipeline_mode = #tpu.pipeline_mode<synchronous>, transform_indices = @transform_2, window_bounds = array<i64: 4, 128>}, {transform_indices = @transform_3, window_bounds = array<i64: 1, 1, 8, 128>}]} {
    %c0_i32 = arith.constant 0 : i32
    %0 = arith.cmpi eq, %arg2, %c0_i32 : i32
    %1 = arith.extui %0 : i1 to i32
    %c0_i32_0 = arith.constant 0 : i32
    %2 = arith.cmpi ne, %1, %c0_i32_0 : i32
    scf.if %2 {
      %cst_41 = arith.constant 0.000000e+00 : f32
      %81 = vector.broadcast %cst_41 : f32 to vector<8x128xf32>
      %c0_42 = arith.constant 0 : index
      %c0_43 = arith.constant 0 : index
      %c0_44 = arith.constant 0 : index
      %c0_45 = arith.constant 0 : index
      %82 = vector.load %arg6[%c0_42, %c0_43, %c0_44, %c0_45] : memref<1x1x8x128xf32, #tpu.memory_space<vmem>>, vector<1x1x8x128xf32>
      %83 = vector.shape_cast %82 : vector<1x1x8x128xf32> to vector<8x128xf32>
      %84 = vector.shape_cast %81 : vector<8x128xf32> to vector<1x1x8x128xf32>
      tpu.vector_store %arg6[%c0_42, %c0_43, %c0_44, %c0_45], %84 {strides = array<i32>} : memref<1x1x8x128xf32, #tpu.memory_space<vmem>>, vector<1x1x8x128xf32>,
    } else {
    }
    %c0 = arith.constant 0 : index
    %c0_1 = arith.constant 0 : index
    %c0_2 = arith.constant 0 : index
    %3 = vector.load %arg4[%c0, %c0_1, %c0_2] : memref<1x8x128xi32, #tpu.memory_space<vmem>>, vector<1x8x128xi32>
    %4 = vector.shape_cast %3 : vector<1x8x128xi32> to vector<8x128xi32>
    %cst = arith.constant 0.000000e+00 : f32
    %5 = vector.broadcast %cst : f32 to vector<8x128xf32>
    %cst_3 = arith.constant 0.000000e+00 : f32
    %6 = vector.broadcast %cst_3 : f32 to vector<8x128xf32>
    %c0_i32_4 = arith.constant 0 : i32
    %7 = vector.broadcast %c0_i32_4 : i32 to vector<8x128xi32>
    %8 = arith.cmpi eq, %4, %7 : vector<8x128xi32>
    %c0_5 = arith.constant 0 : index
    %c0_6 = arith.constant 0 : index
    %c0_7 = arith.constant 0 : index
    %c0_8 = arith.constant 0 : index
    %9 = vector.load %arg3[%c0_5, %c0_6, %c0_7, %c0_8] : memref<1x4x8x128xf32, #tpu.memory_space<vmem>>, vector<1x1x8x128xf32>
    %10 = vector.shape_cast %9 : vector<1x1x8x128xf32> to vector<8x128xf32>
    %11 = arith.select %8, %10, %5 : vector<8x128xi1>, vector<8x128xf32>
    %c0_9 = arith.constant 0 : index
    %c0_10 = arith.constant 0 : index
    %12 = vector.load %arg5[%c0_9, %c0_10] : memref<4x128xf32, #tpu.memory_space<vmem>>, vector<1x128xf32>
    %13 = vector.shape_cast %12 : vector<1x128xf32> to vector<128xf32>
    %14 = vector.shape_cast %13 : vector<128xf32> to vector<1x128xf32>
    %15 = vector.broadcast %14 : vector<1x128xf32> to vector<8x128xf32>
    %16 = arith.select %8, %15, %6 : vector<8x128xi1>, vector<8x128xf32>
    %c1_i32 = arith.constant 1 : i32
    %17 = vector.broadcast %c1_i32 : i32 to vector<8x128xi32>
    %18 = arith.cmpi eq, %4, %17 : vector<8x128xi32>
    %c0_11 = arith.constant 0 : index
    %c1 = arith.constant 1 : index
    %c0_12 = arith.constant 0 : index
    %c0_13 = arith.constant 0 : index
    %19 = vector.load %arg3[%c0_11, %c1, %c0_12, %c0_13] : memref<1x4x8x128xf32, #tpu.memory_space<vmem>>, vector<1x1x8x128xf32>
    %20 = vector.shape_cast %19 : vector<1x1x8x128xf32> to vector<8x128xf32>
    %21 = arith.select %18, %20, %11 : vector<8x128xi1>, vector<8x128xf32>
    %c1_14 = arith.constant 1 : index
    %c0_15 = arith.constant 0 : index
    %22 = vector.load %arg5[%c1_14, %c0_15] : memref<4x128xf32, #tpu.memory_space<vmem>>, vector<1x128xf32>
    %23 = vector.shape_cast %22 : vector<1x128xf32> to vector<128xf32>
    %24 = vector.shape_cast %23 : vector<128xf32> to vector<1x128xf32>
    %25 = vector.broadcast %24 : vector<1x128xf32> to vector<8x128xf32>
    %26 = arith.select %18, %25, %16 : vector<8x128xi1>, vector<8x128xf32>
    %c2_i32 = arith.constant 2 : i32
    %27 = vector.broadcast %c2_i32 : i32 to vector<8x128xi32>
    %28 = arith.cmpi eq, %4, %27 : vector<8x128xi32>
    %c0_16 = arith.constant 0 : index
    %c2 = arith.constant 2 : index
    %c0_17 = arith.constant 0 : index
    %c0_18 = arith.constant 0 : index
    %29 = vector.load %arg3[%c0_16, %c2, %c0_17, %c0_18] : memref<1x4x8x128xf32, #tpu.memory_space<vmem>>, vector<1x1x8x128xf32>
    %30 = vector.shape_cast %29 : vector<1x1x8x128xf32> to vector<8x128xf32>
    %31 = arith.select %28, %30, %21 : vector<8x128xi1>, vector<8x128xf32>
    %c2_19 = arith.constant 2 : index
    %c0_20 = arith.constant 0 : index
    %32 = vector.load %arg5[%c2_19, %c0_20] : memref<4x128xf32, #tpu.memory_space<vmem>>, vector<1x128xf32>
    %33 = vector.shape_cast %32 : vector<1x128xf32> to vector<128xf32>
    %34 = vector.shape_cast %33 : vector<128xf32> to vector<1x128xf32>
    %35 = vector.broadcast %34 : vector<1x128xf32> to vector<8x128xf32>
    %36 = arith.select %28, %35, %26 : vector<8x128xi1>, vector<8x128xf32>
    %c3_i32 = arith.constant 3 : i32
    %37 = vector.broadcast %c3_i32 : i32 to vector<8x128xi32>
    %38 = arith.cmpi eq, %4, %37 : vector<8x128xi32>
    %c0_21 = arith.constant 0 : index
    %c3 = arith.constant 3 : index
    %c0_22 = arith.constant 0 : index
    %c0_23 = arith.constant 0 : index
    %39 = vector.load %arg3[%c0_21, %c3, %c0_22, %c0_23] : memref<1x4x8x128xf32, #tpu.memory_space<vmem>>, vector<1x1x8x128xf32>
    %40 = vector.shape_cast %39 : vector<1x1x8x128xf32> to vector<8x128xf32>
    %41 = arith.select %38, %40, %31 : vector<8x128xi1>, vector<8x128xf32>
    %c3_24 = arith.constant 3 : index
    %c0_25 = arith.constant 0 : index
    %42 = vector.load %arg5[%c3_24, %c0_25] : memref<4x128xf32, #tpu.memory_space<vmem>>, vector<1x128xf32>
    %43 = vector.shape_cast %42 : vector<1x128xf32> to vector<128xf32>
    %44 = vector.shape_cast %43 : vector<128xf32> to vector<1x128xf32>
    %45 = vector.broadcast %44 : vector<1x128xf32> to vector<8x128xf32>
    %46 = arith.select %38, %45, %36 : vector<8x128xi1>, vector<8x128xf32>
    %cst_26 = arith.constant 1.000000e-10 : f32
    %47 = vector.broadcast %cst_26 : f32 to vector<8x128xf32>
    %48 = arith.addf %41, %47 : vector<8x128xf32>
    %c1_i32_27 = arith.constant 1 : i32
    %49 = arith.muli %arg1, %c1_i32_27 : i32
    %50 = arith.addi %49, %arg2 : i32
    %51 = tpu.iota {dimensions = array<i32: 0>} : vector<8x128xi32>
    %52 = tpu.iota {dimensions = array<i32: 1>} : vector<8x128xi32>
    %c8_i32 = arith.constant 8 : i32
    %53 = arith.muli %50, %c8_i32 : i32
    %54 = vector.broadcast %53 : i32 to vector<8x128xi32>
    %55 = arith.addi %54, %51 : vector<8x128xi32>
    %c128_i32 = arith.constant 128 : i32
    %56 = vector.broadcast %c128_i32 : i32 to vector<8x128xi32>
    %57 = arith.muli %55, %56 : vector<8x128xi32>
    %58 = arith.addi %57, %52 : vector<8x128xi32>
    %c256_i32 = arith.constant 256 : i32
    %59 = vector.broadcast %c256_i32 : i32 to vector<8x128xi32>
    %60 = arith.cmpi slt, %58, %59 : vector<8x128xi32>
    %cst_28 = arith.constant 1.000000e+00 : f32
    %61 = vector.broadcast %cst_28 : f32 to vector<8x128xf32>
    %62 = arith.select %60, %48, %61 : vector<8x128xi1>, vector<8x128xf32>
    %cst_29 = arith.constant 0.000000e+00 : f32
    %63 = vector.broadcast %cst_29 : f32 to vector<8x128xf32>
    %64 = arith.select %60, %46, %63 : vector<8x128xi1>, vector<8x128xf32>
    %65 = math.log %62 : vector<8x128xf32>
    %cst_30 = arith.constant 1.000000e+00 : f32
    %66 = vector.broadcast %cst_30 : f32 to vector<8x128xf32>
    %67 = arith.subf %66, %62 : vector<8x128xf32>
    %68 = arith.mulf %67, %67 : vector<8x128xf32>
    %cst_31 = arith.constant 0.000000e+00 : f32
    %69 = vector.broadcast %cst_31 : f32 to vector<8x128xf32>
    %70 = arith.subf %69, %64 : vector<8x128xf32>
    %71 = arith.mulf %70, %68 : vector<8x128xf32>
    %72 = arith.mulf %71, %65 : vector<8x128xf32>
    %c0_32 = arith.constant 0 : index
    %c0_33 = arith.constant 0 : index
    %c0_34 = arith.constant 0 : index
    %c0_35 = arith.constant 0 : index
    %73 = vector.load %arg6[%c0_32, %c0_33, %c0_34, %c0_35] : memref<1x1x8x128xf32, #tpu.memory_space<vmem>>, vector<1x1x8x128xf32>
    %74 = vector.shape_cast %73 : vector<1x1x8x128xf32> to vector<8x128xf32>
    %75 = vector.shape_cast %72 : vector<8x128xf32> to vector<1x8x128xf32>
    %cst_36 = arith.constant dense<0.000000e+00> : vector<8x128xf32>
    %76 = vector.multi_reduction <add>, %75, %cst_36 [0] : vector<1x8x128xf32> to vector<8x128xf32>
    %77 = arith.addf %74, %76 : vector<8x128xf32>
    %c0_37 = arith.constant 0 : index
    %c0_38 = arith.constant 0 : index
    %c0_39 = arith.constant 0 : index
    %c0_40 = arith.constant 0 : index
    %78 = vector.load %arg6[%c0_37, %c0_38, %c0_39, %c0_40] : memref<1x1x8x128xf32, #tpu.memory_space<vmem>>, vector<1x1x8x128xf32>
    %79 = vector.shape_cast %78 : vector<1x1x8x128xf32> to vector<8x128xf32>
    %80 = vector.shape_cast %77 : vector<8x128xf32> to vector<1x1x8x128xf32>
    tpu.vector_store %arg6[%c0_37, %c0_38, %c0_39, %c0_40], %80 {strides = array<i32>} : memref<1x1x8x128xf32, #tpu.memory_space<vmem>>, vector<1x1x8x128xf32>,
    return
  }
  func.func @transform_0(%arg0: i32, %arg1: i32, %arg2: i32) -> (i32, i32, i32, i32) {
    %c1_i32 = arith.constant 1 : i32
    %0 = arith.muli %arg1, %c1_i32 : i32
    %1 = arith.addi %0, %arg2 : i32
    %c0_i32 = arith.constant 0 : i32
    %2 = arith.minsi %1, %c0_i32 : i32
    %c0_i32_0 = arith.constant 0 : i32
    %c0_i32_1 = arith.constant 0 : i32
    %c0_i32_2 = arith.constant 0 : i32
    return %arg0, %c0_i32_0, %2, %c0_i32_1 : i32, i32, i32, i32
  }
  func.func @transform_1(%arg0: i32, %arg1: i32, %arg2: i32) -> (i32, i32, i32) {
    %c1_i32 = arith.constant 1 : i32
    %0 = arith.muli %arg1, %c1_i32 : i32
    %1 = arith.addi %0, %arg2 : i32
    %c0_i32 = arith.constant 0 : i32
    %2 = arith.minsi %1, %c0_i32 : i32
    %c0_i32_0 = arith.constant 0 : i32
    %c0_i32_1 = arith.constant 0 : i32
    return %arg0, %2, %c0_i32_0 : i32, i32, i32
  }
  func.func @transform_2(%arg0: i32, %arg1: i32, %arg2: i32) -> (i32, i32) {
    %c0_i32 = arith.constant 0 : i32
    %c0_i32_0 = arith.constant 0 : i32
    %c0_i32_1 = arith.constant 0 : i32
    return %c0_i32, %c0_i32_0 : i32, i32
  }
  func.func @transform_3(%arg0: i32, %arg1: i32, %arg2: i32) -> (i32, i32, i32, i32) {
    %c0_i32 = arith.constant 0 : i32
    %c0_i32_0 = arith.constant 0 : i32
    %c0_i32_1 = arith.constant 0 : i32
    return %arg0, %arg1, %c0_i32, %c0_i32_0 : i32, i32, i32, i32
  }
}

</mosaic_0001>

<llo_original>
// kernel: tpu_custom_call.1
$region0: #{tpu_custom_call.1}
  #allocation0 [shape = 'u32[]', space=smem, size = 0x4, offset = 0x4, fixed_abs, tag = 'smem constant byte address 0x4 - core index']
  #allocation1 [shape = 'u32[72,128]{1,0:T(1,128)}', space=vmem, size = 0x9000, scoped, tag = 'internal scratch']
  %s0 = inlined_call_operand.hbm [shape: f32[2,4,8,128], index: 0, kind: input, shape index: {}]
  %s1 = inlined_call_operand.hbm [shape: s32[2,8,128], index: 1, kind: input, shape index: {}]
  %s2 = inlined_call_operand.hbm [shape: f32[4,128], index: 2, kind: input, shape index: {}]
  %s3 = inlined_call_operand.hbm [shape: f32[2,1,8,128], index: 3, kind: output, shape index: {}]
  %s4 = sld [smem:[#allocation0]]
  $region61: #{tpu_custom_call.1} parent=0
    _
  %s6 = ssub.s32 1, %s4
  %s7 = scalar_select 0, %s6, %s4
  $region1: #{tpu_custom_call.1} parent=0
    #allocation2 [shape = 'u8[32768]{0}', space=vmem, size = 0x8000, scoped, tag = 'input window, operand 0']
    #allocation3 [shape = 's32[2]{0}', space=sflag, size = 0x8, scoped, tag = 'scoped memory for tpu_custom_call.1']
    #allocation4 [shape = 's32[2]{0}', space=sflag, size = 0x8, scoped, tag = 'scoped memory for tpu_custom_call.1']
    #allocation5 [shape = 'u8[8192]{0}', space=vmem, size = 0x2000, scoped, tag = 'input window, operand 1']
    #allocation6 [shape = 's32[2]{0}', space=sflag, size = 0x8, scoped, tag = 'scoped memory for tpu_custom_call.1']
    #allocation7 [shape = 'u8[2048]{0}', space=vmem, size = 0x800, scoped, tag = 'input window, operand 2, single buffered']
    #allocation8 [shape = 'u8[8192]{0}', space=vmem, size = 0x2000, scoped, tag = 'output window, operand 0']
    %8 = vsyncpa [#allocation3], 0
    %s9 = scalar_lea.sflag [#allocation3], 1
    %10 = vsyncpa %s9, 0
    %11 = vsyncpa [#allocation6], 0
    %s12 = scalar_lea.sflag [#allocation6], 1
    %13 = vsyncpa %s12, 0
    %14 = vsyncpa [#allocation4], 0
    %s15 = scalar_lea.sflag [#allocation4], 1
    %16 = vsyncpa %s15, 0
    loop: start=0, step=1, limit=4
    $region2: #{tpu_custom_call.1} parent=1 // loop_pre_header
      _
    $region3: #{tpu_custom_call.1} parent=1 // loop_header
      %s18 = sphi 0, %s22
      %p19 = scmp.ge.s32.totalorder %s18, 4
      %s25 = sphi 0, %s44
      %s26 = sphi 0, %s40
      %s27 = sphi 0, %s36
      %s28 = sphi 0, %s25
      %s29 = sphi 0, %s26
      %s30 = sphi 0, %s27
      %s31 = sphi 0, %s28
      %s32 = sphi 0, %s29
      %s33 = sphi 0, %s30
      %s55 = sphi 0, %s57
      %s58 = sphi 0, %s55
      %s59 = sphi 0, %s58
      %s75 = sphi 0, %s59
      %s89 = sphi 0, %s91
      %s92 = sphi 0, %s89
      %s93 = sphi 0, %s92
      %s109 = sphi 0, %s93
      %s113 = sphi 0, %s113
      %s115 = sphi 0, %s113
      %s116 = sphi 0, %s115
      %s130 = sphi 0, %s116
      %s138 = sphi 0, %s140
      %s141 = sphi 0, %s138
      %s142 = sphi 0, %s141
      %s158 = sphi 0, %s142
    $region4: #{tpu_custom_call.1} parent=1 // loop_header_branch
      %21 = sbr.rel (%p19) target = $region8
    $region5: #{tpu_custom_call.1} parent=1 // loop_body
      %s23 = ssub.s32 %s18, 1
      %s24 = ssub.s32 %s18, 2
      %s34 = sadd.s32 1, %s27
      %p35 = scmp.ge.s32.totalorder %s34, 1
      %s36 = scalar_select %p35, 0, %s34
      %s37 = sadd.s32 1, %s26
      %s38 = scalar_select %p35, %s37, %s26
      %p39 = scmp.ge.s32.totalorder %s38, 1
      %s40 = scalar_select %p39, 0, %s38
      %s41 = sadd.s32 1, %s25
      %s42 = scalar_select %p39, %s41, %s25
      %p43 = scmp.ge.s32.totalorder %s42, 2
      %s44 = scalar_select %p43, 0, %s42
      %s45 = sadd.s32 %s26, %s27
      %p46 = scmp.lt.s32.totalorder %s45, 0
      %s47 = scalar_select %p46, %s45, 0
      %s48 = sadd.s32 %s40, %s36
      %p49 = scmp.lt.s32.totalorder %s48, 0
      %s50 = scalar_select %p49, %s48, 0
      %s51 = ssub.s32 %s25, %s44
      %s52 = ssub.s32 %s47, %s50
      %s53 = sor.u32 %s51, %s52
      %p54 = scmp.eq.s32.totalorder %s53, 0
      %s56 = sadd.s32 %s55, 1
      %s57 = scalar_select %p54, %s55, %s56
      %p60 = pneg %p54
      %p61 = scmp.eq.s32.totalorder %s18, 1
      %p62 = por %p60, %p61
      %p63 = scmp.ne.s32.totalorder %s55, %s58
      %p64 = scmp.eq.s32.totalorder %s18, 0
      %p65 = por %p63, %p64
      %p66 = scmp.ne.s32.totalorder %s55, %s58
      %p67 = scmp.eq.s32.totalorder %s23, 1
      %p68 = por %p66, %p67
      %p69 = scmp.ne.s32.totalorder %s58, %s59
      %p70 = scmp.eq.s32.totalorder %s23, 0
      %p71 = por %p69, %p70
      %p72 = scmp.ne.s32.totalorder %s58, %s59
      %p73 = scmp.eq.s32.totalorder %s24, 1
      %p74 = por %p72, %p73
      %p76 = scmp.ne.s32.totalorder %s59, %s75
      %p77 = scmp.eq.s32.totalorder %s24, 0
      %p78 = por %p76, %p77
      %s79 = sadd.s32 %s26, %s27
      %p80 = scmp.lt.s32.totalorder %s79, 0
      %s81 = scalar_select %p80, %s79, 0
      %s82 = sadd.s32 %s40, %s36
      %p83 = scmp.lt.s32.totalorder %s82, 0
      %s84 = scalar_select %p83, %s82, 0
      %s85 = ssub.s32 %s25, %s44
      %s86 = ssub.s32 %s81, %s84
      %s87 = sor.u32 %s85, %s86
      %p88 = scmp.eq.s32.totalorder %s87, 0
      %s90 = sadd.s32 %s89, 1
      %s91 = scalar_select %p88, %s89, %s90
      %p94 = pneg %p88
      %p95 = scmp.eq.s32.totalorder %s18, 1
      %p96 = por %p94, %p95
      %p97 = scmp.ne.s32.totalorder %s89, %s92
      %p98 = scmp.eq.s32.totalorder %s18, 0
      %p99 = por %p97, %p98
      %p100 = scmp.ne.s32.totalorder %s89, %s92
      %p101 = scmp.eq.s32.totalorder %s23, 1
      %p102 = por %p100, %p101
      %p103 = scmp.ne.s32.totalorder %s92, %s93
      %p104 = scmp.eq.s32.totalorder %s23, 0
      %p105 = por %p103, %p104
      %p106 = scmp.ne.s32.totalorder %s92, %s93
      %p107 = scmp.eq.s32.totalorder %s24, 1
      %p108 = por %p106, %p107
      %p110 = scmp.ne.s32.totalorder %s93, %s109
      %p111 = scmp.eq.s32.totalorder %s24, 0
      %p112 = por %p110, %p111
      %s114 = sadd.s32 %s113, 1
      %p117 = scmp.eq.s32.totalorder %s18, 1
      %p118 = scmp.ne.s32.totalorder %s113, %s115
      %p119 = scmp.eq.s32.totalorder %s18, 0
      %p120 = por %p118, %p119
      %p121 = scmp.ne.s32.totalorder %s113, %s115
      %p122 = scmp.eq.s32.totalorder %s23, 1
      %p123 = por %p121, %p122
      %p124 = scmp.ne.s32.totalorder %s115, %s116
      %p125 = scmp.eq.s32.totalorder %s23, 0
      %p126 = por %p124, %p125
      %p127 = scmp.ne.s32.totalorder %s115, %s116
      %p128 = scmp.eq.s32.totalorder %s24, 1
      %p129 = por %p127, %p128
      %p131 = scmp.ne.s32.totalorder %s116, %s130
      %p132 = scmp.eq.s32.totalorder %s24, 0
      %p133 = por %p131, %p132
      %s134 = ssub.s32 %s25, %s44
      %s135 = ssub.s32 %s26, %s40
      %s136 = sor.u32 %s134, %s135
      %p137 = scmp.eq.s32.totalorder %s136, 0
      %s139 = sadd.s32 %s138, 1
      %s140 = scalar_select %p137, %s138, %s139
      %p143 = pneg %p137
      %p144 = scmp.eq.s32.totalorder %s18, 1
      %p145 = por %p143, %p144
      %p146 = scmp.ne.s32.totalorder %s138, %s141
      %p147 = scmp.eq.s32.totalorder %s18, 0
      %p148 = por %p146, %p147
      %p149 = scmp.ne.s32.totalorder %s138, %s141
      %p150 = scmp.eq.s32.totalorder %s23, 1
      %p151 = por %p149, %p150
      %p152 = scmp.ne.s32.totalorder %s141, %s142
      %p153 = scmp.eq.s32.totalorder %s23, 0
      %p154 = por %p152, %p153
      %p155 = scmp.ne.s32.totalorder %s141, %s142
      %p156 = scmp.eq.s32.totalorder %s24, 1
      %p157 = por %p155, %p156
      %p159 = scmp.ne.s32.totalorder %s142, %s158
      %p160 = scmp.eq.s32.totalorder %s24, 0
      %p161 = por %p159, %p160
      %p162 = scmp.le.s32.totalorder 1, %s18
      %p163 = scmp.lt.s32.totalorder %s18, 3
      %p164 = pnand %p162, %p163
      %p165 = pneg %p164
      // Predicated region
      $region9: #{tpu_custom_call.1} parent=5 // pred_check
        _
      $region10: #{tpu_custom_call.1} parent=5 // pred_check_branch
        %167 = sbr.rel (%p164) target = $region12
      $region11: #{tpu_custom_call.1} parent=5 // pred_region
        %s168 = ssub.s32 %s18, 1
        // Predicated region
        $region13: #{tpu_custom_call.1} parent=11 // pred_check
          %p169 = pneg %p126
        $region14: #{tpu_custom_call.1} parent=11 // pred_check_branch
          %171 = sbr.rel (%p169) target = $region16
        $region15: #{tpu_custom_call.1} parent=11 // pred_region
          %173 = vsyncadd [#allocation6], 0
          %s175 = sshll.u32 %s2, 4
          %s176 = int_to_ptr.hbm [resolvable:$true] %s175
          %s177 = sshll.u32 [#allocation7], 4
          %s178 = int_to_ptr.vmem [resolvable:$true] %s177
          %180 = dma.hbm_to_vmem [thread:$0]  %s176, 64, %s178, [#allocation6]
        $region16: #{tpu_custom_call.1} parent=11 // pred_fallthru
          _
      $region12: #{tpu_custom_call.1} parent=5 // pred_fallthru
        _
      %p181 = scmp.lt.s32.totalorder %s18, 2
      // Predicated region
      $region17: #{tpu_custom_call.1} parent=5 // pred_check
        %p182 = pneg %p181
      $region18: #{tpu_custom_call.1} parent=5 // pred_check_branch
        %184 = sbr.rel (%p182) target = $region20
      $region19: #{tpu_custom_call.1} parent=5 // pred_region
        // Predicated region
        $region21: #{tpu_custom_call.1} parent=19 // pred_check
          %p185 = pneg %p65
        $region22: #{tpu_custom_call.1} parent=19 // pred_check_branch
          %187 = sbr.rel (%p185) target = $region24
        $region23: #{tpu_custom_call.1} parent=19 // pred_region
          %s188 = sand.u32 %s55, 1
          %s189 = scalar_lea.sflag [#allocation3], %s188
          %s190 = sand.u32 %s55, 1
          %s191 = smul.addr %s190, 32
          %s192 = scalar_lea.vmem [#allocation2], %s191
          %s193 = sadd.s32 %s26, %s27
          %p194 = scmp.lt.s32.totalorder %s193, 0
          %s195 = scalar_select %p194, %s193, 0
          %197 = vsyncadd %s189, 0
          %s198 = smul.addr %s25, 4
          %s199 = sadd.s32 %s195, %s198
          %s200 = smul.addr %s199, 8
          %s201 = scalar_lea.hbm %s0, %s200
          %s202 = sshll.u32 %s201, 4
          %s203 = int_to_ptr.hbm [resolvable:$true] %s202
          %s204 = sshll.u32 %s192, 4
          %s205 = int_to_ptr.vmem [resolvable:$true] %s204
          %210 = dma.hbm_to_vmem [thread:$0]  %s203, 512, %s205, %s189, 128, 128, 8
        $region24: #{tpu_custom_call.1} parent=19 // pred_fallthru
          _
        // Predicated region
        $region25: #{tpu_custom_call.1} parent=19 // pred_check
          %p211 = pneg %p99
        $region26: #{tpu_custom_call.1} parent=19 // pred_check_branch
          %213 = sbr.rel (%p211) target = $region28
        $region27: #{tpu_custom_call.1} parent=19 // pred_region
          %s214 = sand.u32 %s18, 1
          %s215 = scalar_lea.sflag [#allocation6], %s214
          %s216 = sand.u32 %s89, 1
          %s217 = smul.addr %s216, 8
          %s218 = scalar_lea.vmem [#allocation5], %s217
          %s219 = sadd.s32 %s26, %s27
          %p220 = scmp.lt.s32.totalorder %s219, 0
          %s221 = scalar_select %p220, %s219, 0
          %223 = vsyncadd %s215, 0
          %s224 = sadd.s32 %s221, %s25
          %s225 = smul.addr %s224, 8
          %s226 = scalar_lea.hbm %s1, %s225
          %s228 = sshll.u32 %s226, 4
          %s229 = int_to_ptr.hbm [resolvable:$true] %s228
          %s230 = sshll.u32 %s218, 4
          %s231 = int_to_ptr.vmem [resolvable:$true] %s230
          %233 = dma.hbm_to_vmem [thread:$0]  %s229, 128, %s231, %s215
        $region28: #{tpu_custom_call.1} parent=19 // pred_fallthru
          _
      $region20: #{tpu_custom_call.1} parent=5 // pred_fallthru
        _
      %p234 = scmp.le.s32.totalorder 1, %s18
      %p235 = scmp.lt.s32.totalorder %s18, 3
      %p236 = pnand %p234, %p235
      %p237 = pneg %p236
      // Predicated region
      $region29: #{tpu_custom_call.1} parent=5 // pred_check
        _
      $region30: #{tpu_custom_call.1} parent=5 // pred_check_branch
        %239 = sbr.rel (%p236) target = $region32
      $region31: #{tpu_custom_call.1} parent=5 // pred_region
        %s240 = ssub.s32 %s18, 1
        %s241 = sand.u32 %s58, 1
        %s242 = scalar_lea.sflag [#allocation3], %s241
        %s243 = sand.u32 %s58, 1
        %s244 = smul.addr %s243, 32
        %s245 = scalar_lea.vmem [#allocation2], %s244
        // Predicated region
        $region33: #{tpu_custom_call.1} parent=31 // pred_check
          %p246 = pneg %p71
        $region34: #{tpu_custom_call.1} parent=31 // pred_check_branch
          %248 = sbr.rel (%p246) target = $region36
        $region35: #{tpu_custom_call.1} parent=31 // pred_region
          %250 = dma.done %s242, 512
        $region36: #{tpu_custom_call.1} parent=31 // pred_fallthru
          _
        %s251 = sand.u32 %s23, 1
        %s252 = scalar_lea.sflag [#allocation6], %s251
        %s253 = sand.u32 %s92, 1
        %s254 = smul.addr %s253, 8
        %s255 = scalar_lea.vmem [#allocation5], %s254
        // Predicated region
        $region37: #{tpu_custom_call.1} parent=31 // pred_check
          %p256 = pneg %p105
        $region38: #{tpu_custom_call.1} parent=31 // pred_check_branch
          %258 = sbr.rel (%p256) target = $region40
        $region39: #{tpu_custom_call.1} parent=31 // pred_region
          %260 = dma.done %s252, 128
        $region40: #{tpu_custom_call.1} parent=31 // pred_fallthru
          _
        // Predicated region
        $region41: #{tpu_custom_call.1} parent=31 // pred_check
          %p261 = pneg %p126
        $region42: #{tpu_custom_call.1} parent=31 // pred_check_branch
          %263 = sbr.rel (%p261) target = $region44
        $region43: #{tpu_custom_call.1} parent=31 // pred_region
          %265 = dma.done [#allocation6], 64
        $region44: #{tpu_custom_call.1} parent=31 // pred_fallthru
          _
        %s266 = sand.u32 %s58, 1
        %s267 = scalar_lea.sflag [#allocation3], %s266
        %s268 = sand.u32 %s58, 1
        %s269 = smul.addr %s268, 32
        %s270 = scalar_lea.vmem [#allocation2], %s269
        %p271 = pneg %p71
        %p272 = pneg %p68
        %s273 = sand.u32 %s23, 1
        %s274 = scalar_lea.sflag [#allocation6], %s273
        %s275 = sand.u32 %s92, 1
        %s276 = smul.addr %s275, 8
        %s277 = scalar_lea.vmem [#allocation5], %s276
        %p278 = pneg %p105
        %p279 = pneg %p102
        %p280 = pneg %p126
        %p281 = pneg %p123
        %p282 = pneg %p154
        %p283 = pneg %p151
        %s284 = sand.u32 %s141, 1
        %s285 = scalar_lea.sflag [#allocation4], %s284
        %s286 = sand.u32 %s141, 1
        %s287 = smul.addr %s286, 8
        %s288 = scalar_lea.vmem [#allocation8], %s287
        %s289 = sadd.s32 %s29, %s30
        %p290 = scmp.lt.s32.totalorder %s289, 0
        %s291 = scalar_select %p290, %s289, 0
        %s292 = sadd.s32 %s29, %s30
        %p293 = scmp.lt.s32.totalorder %s292, 0
        %s294 = scalar_select %p293, %s292, 0
        %p295 = scmp.eq.s32.totalorder %s30, 0
        // Predicated region
        $region45: #{tpu_custom_call.1} parent=31 // pred_check
          %p296 = pneg %p295
        $region46: #{tpu_custom_call.1} parent=31 // pred_check_branch
          %298 = sbr.rel (%p296) target = $region48
        $region47: #{tpu_custom_call.1} parent=31 // pred_region
          %299 = vst [vmem:[%s288] sm:$0xff] 0.0
        $region48: #{tpu_custom_call.1} parent=31 // pred_fallthru
          _
        %v300 = vld [vmem:[%s255] sm:$0xff]
        %vm301 = vcmp.eq.s32.totalorder %v300, 0
        %v302 = vld [vmem:[%s245] sm:$0xff]
        %v303 = vsel %vm301, %v302, 0.0
        %v304 = vld [vmem:[#allocation7] sm:$0x1]
        %v305 = vperm.slane %v304, 0
        %v306 = vsel %vm301, %v305, 0.0
        %vm307 = vcmp.eq.s32.totalorder %v300, 1
        %s308 = scalar_lea.vmem %s245, 8 [#allocation2]
        %v309 = vld [vmem:[%s308] sm:$0xff]
        %v310 = vsel %vm307, %v309, %v303
        %v311 = vld [vmem:[#allocation7 + $0x1] sm:$0x1]
        %v312 = vperm.slane %v311, 0
        %v313 = vsel %vm307, %v312, %v306
        %vm314 = vcmp.eq.s32.totalorder %v300, 2
        %s315 = scalar_lea.vmem %s245, 16 [#allocation2]
        %v316 = vld [vmem:[%s315] sm:$0xff]
        %v317 = vsel %vm314, %v316, %v310
        %v318 = vld [vmem:[#allocation7 + $0x2] sm:$0x1]
        %v319 = vperm.slane %v318, 0
        %v320 = vsel %vm314, %v319, %v313
        %vm321 = vcmp.eq.s32.totalorder %v300, 3
        %s322 = scalar_lea.vmem %s245, 24 [#allocation2]
        %v323 = vld [vmem:[%s322] sm:$0xff]
        %v324 = vsel %vm321, %v323, %v317
        %v325 = vld [vmem:[#allocation7 + $0x3] sm:$0x1]
        %v326 = vperm.slane %v325, 0
        %v327 = vsel %vm321, %v326, %v320
        %v328 = vadd.f32 %v324, 1e-10
        %s329 = sadd.s32 %s29, %s30
        %v330 = vlaneseq
        %v331 = vshrl.u32 %v330, 7
        %v332 = vlaneseq
        %v333 = vand.u32 %v332, 127
        %s334 = smul.u32 %s329, 8
        %v335 = vstv %s334
        %v336 = vadd.s32 %v335, %v331
        %v337 = vmul.u32 %v336, 128
        %v338 = vadd.s32 %v337, %v333
        %vm339 = vcmp.lt.s32.totalorder %v338, 256
        %v340 = vsel %vm339, %v328, 1.0
        %v341 = vsel %vm339, %v327, 0.0
        %v342 = vlog2.pop %v340
        %v343 = vmul.f32 %v342, 0.6931472
        %v344 = vsub.f32 1.0, %v340
        %v345 = vmul.f32 %v344, %v344
        %v346 = vsub.f32 0.0, %v341
        %v347 = vmul.f32 %v346, %v345
        %v348 = vmul.f32 %v347, %v343
        %v349 = vld [vmem:[%s288] sm:$0xff]
        %v350 = vadd.f32 %v348, 0.0
        %v351 = vadd.f32 %v349, %v350
        %352 = vst [vmem:[%s288] sm:$0xff] %v351
        %s353 = sand.u32 %s141, 1
        %s354 = scalar_lea.sflag [#allocation4], %s353
        %s355 = sand.u32 %s141, 1
        %s356 = smul.addr %s355, 8
        %s357 = scalar_lea.vmem [#allocation8], %s356
        // Predicated region
        $region49: #{tpu_custom_call.1} parent=31 // pred_check
          %p358 = pneg %p151
        $region50: #{tpu_custom_call.1} parent=31 // pred_check_branch
          %360 = sbr.rel (%p358) target = $region52
        $region51: #{tpu_custom_call.1} parent=31 // pred_region
          %362 = vsyncadd %s354, 0
          %s363 = sadd.s32 %s29, %s28
          %s364 = smul.addr %s363, 8
          %s365 = scalar_lea.hbm %s3, %s364
          %s367 = sshll.u32 %s357, 4
          %s368 = int_to_ptr.vmem [resolvable:$true] %s367
          %s369 = sshll.u32 %s365, 4
          %s370 = int_to_ptr.hbm [resolvable:$true] %s369
          %372 = dma.vmem_to_hbm [thread:$0]  %s368, 128, %s370, %s354
        $region52: #{tpu_custom_call.1} parent=31 // pred_fallthru
          _
      $region32: #{tpu_custom_call.1} parent=5 // pred_fallthru
        _
      %p373 = scmp.le.s32.totalorder 2, %s18
      // Predicated region
      $region53: #{tpu_custom_call.1} parent=5 // pred_check
        %p374 = pneg %p373
      $region54: #{tpu_custom_call.1} parent=5 // pred_check_branch
        %376 = sbr.rel (%p374) target = $region56
      $region55: #{tpu_custom_call.1} parent=5 // pred_region
        %s377 = ssub.s32 %s18, 2
        // Predicated region
        $region57: #{tpu_custom_call.1} parent=55 // pred_check
          %p378 = pneg %p157
        $region58: #{tpu_custom_call.1} parent=55 // pred_check_branch
          %380 = sbr.rel (%p378) target = $region60
        $region59: #{tpu_custom_call.1} parent=55 // pred_region
          %s381 = sand.u32 %s142, 1
          %s382 = scalar_lea.sflag [#allocation4], %s381
          %s383 = sand.u32 %s142, 1
          %s384 = smul.addr %s383, 8
          %s385 = scalar_lea.vmem [#allocation8], %s384
          %387 = dma.done %s382, 128
        $region60: #{tpu_custom_call.1} parent=55 // pred_fallthru
          _
      $region56: #{tpu_custom_call.1} parent=5 // pred_fallthru
        _
    $region6: #{tpu_custom_call.1} parent=1 // loop_footer
      %s22 = sadd.s32 1, %s18
    $region7: #{tpu_custom_call.1} parent=1 // loop_footer_branch
      %17 = sbr.rel target = $region3
    $region8: #{tpu_custom_call.1} parent=1 // loop_exit
      _
    %388 = vsyncpa [#allocation3], 1
    %s389 = scalar_lea.sflag [#allocation3], 1
    %390 = vsyncpa %s389, 1
    %391 = vsyncpa [#allocation6], 1
    %s392 = scalar_lea.sflag [#allocation6], 1
    %393 = vsyncpa %s392, 1
    %394 = vsyncpa [#allocation4], 1
    %s395 = scalar_lea.sflag [#allocation4], 1
    %396 = vsyncpa %s395, 1

</llo_original>
